<compile_context>
chip_gen: v5e
topology: v5e:2x2
jax: 0.10.0
libtpu: 0.0.40
codegen_flags: <defaults>
</compile_context>

<pallas_src>
import jax
import jax.numpy as jnp
from jax.experimental import pallas as pl
from jax.experimental.pallas import tpu as pltpu


def _pos_embed_kernel(x_ref, g_ref, w0_ref, w1_ref, b_ref, o_ref, pos_ref):
    # x_ref/o_ref: (Bt, C, HWt)   g_ref: (2, HWt)
    # w0_ref/w1_ref/b_ref: (C, 1) pos_ref: (C, HWt) VMEM scratch
    # Compute the positional map once per HW tile (batch axis is the inner grid
    # axis), reuse it for every batch block of this tile.
    @pl.when(pl.program_id(1) == 0)
    def _():
        pos_ref[...] = (
            w0_ref[...] * g_ref[0:1, :]      # (C,1)*(1,HWt) -> (C,HWt)  VPU FMA
            + w1_ref[...] * g_ref[1:2, :]
            + b_ref[...]
        )

    pos = pos_ref[...]
    # Unrolled residual add per batch element: rank-2 loads/stores, lane-dense.
    for bb in range(x_ref.shape[0]):
        o_ref[bb] = (x_ref[bb].astype(jnp.float32) + pos).astype(o_ref.dtype)


def _choose_tiles(B, C, HW, itemsize, max_tile_bytes=2 << 20, max_lanes=2048):
    """Pick (Bt, HWt): big lane-dense blocks, batch collapsed as far as VMEM allows."""
    # HW tile: full extent if small or not 128-divisible, else the largest
    # multiple of 128 dividing HW, capped at max_lanes lanes.
    if HW % 128 != 0 or HW <= max_lanes:
        hwt = HW
    else:
        t = max_lanes - (max_lanes % 128)
        while t >= 128 and HW % t != 0:
            t -= 128
        hwt = t if t >= 128 else HW

    # Batch tile: largest divisor of B whose (Bt, C, HWt) x-block fits the budget.
    bt = 1
    for cand in range(B, 0, -1):
        if B % cand == 0 and cand * C * hwt * itemsize <= max_tile_bytes:
            bt = cand
            break
    return bt, hwt


def coordinate_position_embed(x, grid, weight, bias):
    """x: (B, C, H, W); grid: (2, H, W); weight: (C, 2); bias: (C,)."""
    B, C, H, W = x.shape
    HW = H * W

    x_flat = x.reshape(B, C, HW)
    g_flat = grid.reshape(2, HW).astype(jnp.float32)
    w0 = weight[:, 0:1].astype(jnp.float32)          # (C, 1)
    w1 = weight[:, 1:2].astype(jnp.float32)          # (C, 1)
    b_col = bias.reshape(C, 1).astype(jnp.float32)   # (C, 1)

    Bt, HWt = _choose_tiles(B, C, HW, jnp.dtype(x.dtype).itemsize)
    n_b = B // Bt
    n_hw = HW // HWt

    out_flat = pl.pallas_call(
        _pos_embed_kernel,
        out_shape=jax.ShapeDtypeStruct((B, C, HW), x.dtype),
        grid_spec=pltpu.PrefetchScalarGridSpec(
            num_scalar_prefetch=0,
            # hw tiles outer ("parallel" -> megacore sharding on v7x), batch
            # blocks inner ("arbitrary" -> pos scratch reuse across b blocks).
            grid=(n_hw, n_b),
            in_specs=[
                pl.BlockSpec((Bt, C, HWt), lambda hw, b: (b, 0, hw)),
                pl.BlockSpec((2, HWt), lambda hw, b: (0, hw)),
                pl.BlockSpec((C, 1), lambda hw, b: (0, 0)),
                pl.BlockSpec((C, 1), lambda hw, b: (0, 0)),
                pl.BlockSpec((C, 1), lambda hw, b: (0, 0)),
            ],
            out_specs=pl.BlockSpec((Bt, C, HWt), lambda hw, b: (b, 0, hw)),
            scratch_shapes=[pltpu.VMEM((C, HWt), jnp.float32)],
        ),
        compiler_params=pltpu.CompilerParams(
            dimension_semantics=("parallel", "arbitrary"),
        ),
    )(x_flat, g_flat, w0, w1, b_col)

    return out_flat.reshape(B, C, H, W)


def build_grid(size, bounds=(-1.0, 1.0)):
    """Matches CoordinatePositionEmbed.build_grid (add_inverse=False): (2, H, W)."""
    h, w = size
    ys = jnp.linspace(bounds[0], bounds[1], h, dtype=jnp.float32)
    xs = jnp.linspace(bounds[0], bounds[1], w, dtype=jnp.float32)
    gy, gx = jnp.meshgrid(ys, xs, indexing="ij")
    return jnp.stack((gy, gx), axis=0)


def init_proj_params(key, dim, in_ch=2):
    """Conv2d(in_ch, dim, 1) with xavier_uniform(gain=1.0) weight, zero bias."""
    fan_in = in_ch * 1 * 1
    fan_out = dim * 1 * 1
    bound = (6.0 / (fan_in + fan_out)) ** 0.5
    w = jax.random.uniform(key, (dim, in_ch), dtype=jnp.float32, minval=-bound, maxval=bound)
    b = jnp.zeros((dim,), dtype=jnp.float32)
    return w, b


if __name__ == "__main__":
    B, C, H, W = 2, 32, 16, 16  # dim=32, size=(16, 16)

    key = jax.random.PRNGKey(0)
    k_x, k_w = jax.random.split(key)

    x = jax.random.normal(k_x, (B, C, H, W), dtype=jnp.float32)
    grid = build_grid((H, W))
    weight, bias = init_proj_params(k_w, C)

    out = coordinate_position_embed(x, grid, weight, bias)
    out = jax.block_until_ready(out)

    # Reference in plain JAX: x + (W @ grid + b), broadcast over batch.
    pos_ref = jnp.einsum("dc,chw->dhw", weight, grid) + bias[:, None, None]
    ref = x + pos_ref[None]
    assert out.shape == (B, C, H, W)
    assert jnp.allclose(out, ref, atol=1e-5, rtol=1e-5)

    print("KERNEL_OK")
</pallas_src>

<mosaic_0001>
module attributes {stable_mosaic.version = 11 : i64} {
  func.func @_pos_embed_kernel(%arg0: i32, %arg1: i32, %arg2: memref<2x32x256xf32, #tpu.memory_space<vmem>>, %arg3: memref<2x256xf32, #tpu.memory_space<vmem>>, %arg4: memref<32x1xf32, #tpu.memory_space<vmem>>, %arg5: memref<32x1xf32, #tpu.memory_space<vmem>>, %arg6: memref<32x1xf32, #tpu.memory_space<vmem>>, %arg7: memref<2x32x256xf32, #tpu.memory_space<vmem>>, %arg8: memref<32x256xf32, #tpu.memory_space<vmem>>) attributes {dimension_semantics = [#tpu.dimension_semantics<parallel>, #tpu.dimension_semantics<arbitrary>], iteration_bounds = array<i64: 1, 1>, scalar_prefetch = 0 : i64, scratch_operands = 1 : i64, tpu.core_type = #tpu.core_type<tc>, window_params = [{transform_indices = @transform_0, window_bounds = array<i64: 2, 32, 256>}, {transform_indices = @transform_1, window_bounds = array<i64: 2, 256>}, {pipeline_mode = #tpu.pipeline_mode<synchronous>, transform_indices = @transform_2, window_bounds = array<i64: 32, 1>}, {pipeline_mode = #tpu.pipeline_mode<synchronous>, transform_indices = @transform_3, window_bounds = array<i64: 32, 1>}, {pipeline_mode = #tpu.pipeline_mode<synchronous>, transform_indices = @transform_4, window_bounds = array<i64: 32, 1>}, {transform_indices = @transform_5, window_bounds = array<i64: 2, 32, 256>}]} {
    %c0_i32 = arith.constant 0 : i32
    %0 = arith.cmpi eq, %arg1, %c0_i32 : i32
    %1 = arith.extui %0 : i1 to i32
    %c0_i32_0 = arith.constant 0 : i32
    %2 = arith.cmpi ne, %1, %c0_i32_0 : i32
    scf.if %2 {
      %c0_13 = arith.constant 0 : index
      %c0_14 = arith.constant 0 : index
      %16 = vector.load %arg4[%c0_13, %c0_14] : memref<32x1xf32, #tpu.memory_space<vmem>>, vector<32x1xf32>
      %c0_15 = arith.constant 0 : index
      %c0_16 = arith.constant 0 : index
      %17 = vector.load %arg3[%c0_15, %c0_16] : memref<2x256xf32, #tpu.memory_space<vmem>>, vector<1x256xf32>
      %18 = vector.broadcast %16 : vector<32x1xf32> to vector<32x256xf32>
      %19 = vector.broadcast %17 : vector<1x256xf32> to vector<32x256xf32>
      %20 = arith.mulf %18, %19 : vector<32x256xf32>
      %c0_17 = arith.constant 0 : index
      %c0_18 = arith.constant 0 : index
      %21 = vector.load %arg5[%c0_17, %c0_18] : memref<32x1xf32, #tpu.memory_space<vmem>>, vector<32x1xf32>
      %c1_19 = arith.constant 1 : index
      %c0_20 = arith.constant 0 : index
      %22 = vector.load %arg3[%c1_19, %c0_20] : memref<2x256xf32, #tpu.memory_space<vmem>>, vector<1x256xf32>
      %23 = vector.broadcast %21 : vector<32x1xf32> to vector<32x256xf32>
      %24 = vector.broadcast %22 : vector<1x256xf32> to vector<32x256xf32>
      %25 = arith.mulf %23, %24 : vector<32x256xf32>
      %26 = arith.addf %20, %25 : vector<32x256xf32>
      %c0_21 = arith.constant 0 : index
      %c0_22 = arith.constant 0 : index
      %27 = vector.load %arg6[%c0_21, %c0_22] : memref<32x1xf32, #tpu.memory_space<vmem>>, vector<32x1xf32>
      %28 = vector.broadcast %27 : vector<32x1xf32> to vector<32x256xf32>
      %29 = arith.addf %26, %28 : vector<32x256xf32>
      %c0_23 = arith.constant 0 : index
      %c0_24 = arith.constant 0 : index
      %30 = vector.load %arg8[%c0_23, %c0_24] : memref<32x256xf32, #tpu.memory_space<vmem>>, vector<32x256xf32>
      tpu.vector_store %arg8[%c0_23, %c0_24], %29 {strides = array<i32>} : memref<32x256xf32, #tpu.memory_space<vmem>>, vector<32x256xf32>,
    } else {
    }
    %c0 = arith.constant 0 : index
    %c0_1 = arith.constant 0 : index
    %3 = vector.load %arg8[%c0, %c0_1] : memref<32x256xf32, #tpu.memory_space<vmem>>, vector<32x256xf32>
    %c0_2 = arith.constant 0 : index
    %c0_3 = arith.constant 0 : index
    %c0_4 = arith.constant 0 : index
    %4 = vector.load %arg2[%c0_2, %c0_3, %c0_4] : memref<2x32x256xf32, #tpu.memory_space<vmem>>, vector<1x32x256xf32>
    %5 = vector.shape_cast %4 : vector<1x32x256xf32> to vector<32x256xf32>
    %6 = arith.addf %5, %3 : vector<32x256xf32>
    %c0_5 = arith.constant 0 : index
    %c0_6 = arith.constant 0 : index
    %c0_7 = arith.constant 0 : index
    %7 = vector.load %arg7[%c0_5, %c0_6, %c0_7] : memref<2x32x256xf32, #tpu.memory_space<vmem>>, vector<1x32x256xf32>
    %8 = vector.shape_cast %7 : vector<1x32x256xf32> to vector<32x256xf32>
    %9 = vector.shape_cast %6 : vector<32x256xf32> to vector<1x32x256xf32>
    tpu.vector_store %arg7[%c0_5, %c0_6, %c0_7], %9 {strides = array<i32>} : memref<2x32x256xf32, #tpu.memory_space<vmem>>, vector<1x32x256xf32>,
    %c1 = arith.constant 1 : index
    %c0_8 = arith.constant 0 : index
    %c0_9 = arith.constant 0 : index
    %10 = vector.load %arg2[%c1, %c0_8, %c0_9] : memref<2x32x256xf32, #tpu.memory_space<vmem>>, vector<1x32x256xf32>
    %11 = vector.shape_cast %10 : vector<1x32x256xf32> to vector<32x256xf32>
    %12 = arith.addf %11, %3 : vector<32x256xf32>
    %c1_10 = arith.constant 1 : index
    %c0_11 = arith.constant 0 : index
    %c0_12 = arith.constant 0 : index
    %13 = vector.load %arg7[%c1_10, %c0_11, %c0_12] : memref<2x32x256xf32, #tpu.memory_space<vmem>>, vector<1x32x256xf32>
    %14 = vector.shape_cast %13 : vector<1x32x256xf32> to vector<32x256xf32>
    %15 = vector.shape_cast %12 : vector<32x256xf32> to vector<1x32x256xf32>
    tpu.vector_store %arg7[%c1_10, %c0_11, %c0_12], %15 {strides = array<i32>} : memref<2x32x256xf32, #tpu.memory_space<vmem>>, vector<1x32x256xf32>,
    return
  }
  func.func @transform_0(%arg0: i32, %arg1: i32) -> (i32, i32, i32) {
    %c0_i32 = arith.constant 0 : i32
    %c0_i32_0 = arith.constant 0 : i32
    return %arg1, %c0_i32, %arg0 : i32, i32, i32
  }
  func.func @transform_1(%arg0: i32, %arg1: i32) -> (i32, i32) {
    %c0_i32 = arith.constant 0 : i32
    %c0_i32_0 = arith.constant 0 : i32
    return %c0_i32, %arg0 : i32, i32
  }
  func.func @transform_2(%arg0: i32, %arg1: i32) -> (i32, i32) {
    %c0_i32 = arith.constant 0 : i32
    %c0_i32_0 = arith.constant 0 : i32
    %c0_i32_1 = arith.constant 0 : i32
    return %c0_i32, %c0_i32_0 : i32, i32
  }
  func.func @transform_3(%arg0: i32, %arg1: i32) -> (i32, i32) {
    %c0_i32 = arith.constant 0 : i32
    %c0_i32_0 = arith.constant 0 : i32
    %c0_i32_1 = arith.constant 0 : i32
    return %c0_i32, %c0_i32_0 : i32, i32
  }
  func.func @transform_4(%arg0: i32, %arg1: i32) -> (i32, i32) {
    %c0_i32 = arith.constant 0 : i32
    %c0_i32_0 = arith.constant 0 : i32
    %c0_i32_1 = arith.constant 0 : i32
    return %c0_i32, %c0_i32_0 : i32, i32
  }
  func.func @transform_5(%arg0: i32, %arg1: i32) -> (i32, i32, i32) {
    %c0_i32 = arith.constant 0 : i32
    %c0_i32_0 = arith.constant 0 : i32
    return %arg1, %c0_i32, %arg0 : i32, i32, i32
  }
}

</mosaic_0001>

<llo_original>
// kernel: tpu_custom_call.1
$region0: #{tpu_custom_call.1}
  #allocation0 [shape = 'u32[]', space=smem, size = 0x4, offset = 0x4, fixed_abs, tag = 'smem constant byte address 0x4 - core index']
  #allocation1 [shape = 'u32[72,128]{1,0:T(1,128)}', space=vmem, size = 0x9000, scoped, tag = 'internal scratch']
  #allocation2 [shape = 'f32[32,256]{1,0:T(8,128)}', space=vmem, size = 0x8000, scoped, tag = 'scratch operand']
  %s0 = inlined_call_operand.hbm [shape: f32[2,32,256], index: 0, kind: input, shape index: {}]
  %s1 = inlined_call_operand.vmem [shape: f32[2,256], index: 1, kind: input, shape index: {}]
  %s2 = inlined_call_operand.vmem [shape: f32[32,1], index: 2, kind: input, shape index: {}]
  %s3 = inlined_call_operand.vmem [shape: f32[32,1], index: 3, kind: input, shape index: {}]
  %s4 = inlined_call_operand.vmem [shape: f32[32,1], index: 4, kind: input, shape index: {}]
  %s5 = inlined_call_operand.hbm [shape: f32[2,32,256], index: 5, kind: output, shape index: {}]
  %s6 = sld [smem:[#allocation0]]
  $region38: #{tpu_custom_call.1} parent=0
    _
  %s8 = ssub.s32 1, %s6
  %s9 = scalar_select 0, %s8, %s6
  $region1: #{tpu_custom_call.1} parent=0
    #allocation3 [shape = 'u8[65536]{0}', space=vmem, size = 0x10000, scoped, tag = 'input window, operand 0, single buffered']
    #allocation4 [shape = 's32[1]{0}', space=sflag, size = 0x4, scoped, tag = 'scoped memory for tpu_custom_call.1']
    #allocation5 [shape = 's32[1]{0}', space=sflag, size = 0x4, scoped, tag = 'scoped memory for tpu_custom_call.1']
    #allocation6 [shape = 'u8[65536]{0}', space=vmem, size = 0x10000, scoped, tag = 'output window, operand 0, single buffered']
    %10 = vsyncpa [#allocation4], 0
    %11 = vsyncpa [#allocation5], 0
    // Predicated region
    $region2: #{tpu_custom_call.1} parent=1 // pred_check
      _
    $region3: #{tpu_custom_call.1} parent=1 // pred_check_branch
      %13 = sbr.rel (0) target = $region5
    $region4: #{tpu_custom_call.1} parent=1 // pred_region
      %15 = vsyncadd [#allocation4], 0
      %s16 = sshll.u32 %s0, 4
      %s17 = int_to_ptr.hbm [resolvable:$true] %s16
      %s18 = sshll.u32 [#allocation3], 4
      %s19 = int_to_ptr.vmem [resolvable:$true] %s18
      %24 = dma.hbm_to_vmem [thread:$0]  %s17, 2048, %s19, [#allocation4], 256, 256, 16
    $region5: #{tpu_custom_call.1} parent=1 // pred_fallthru
      _
    // Predicated region
    $region6: #{tpu_custom_call.1} parent=1 // pred_check
      _
    $region7: #{tpu_custom_call.1} parent=1 // pred_check_branch
      %26 = sbr.rel (0) target = $region9
    $region8: #{tpu_custom_call.1} parent=1 // pred_region
      _
    $region9: #{tpu_custom_call.1} parent=1 // pred_fallthru
      _
    // Predicated region
    $region10: #{tpu_custom_call.1} parent=1 // pred_check
      _
    $region11: #{tpu_custom_call.1} parent=1 // pred_check_branch
      %28 = sbr.rel (0) target = $region13
    $region12: #{tpu_custom_call.1} parent=1 // pred_region
      _
    $region13: #{tpu_custom_call.1} parent=1 // pred_fallthru
      _
    // Predicated region
    $region14: #{tpu_custom_call.1} parent=1 // pred_check
      _
    $region15: #{tpu_custom_call.1} parent=1 // pred_check_branch
      %30 = sbr.rel (0) target = $region17
    $region16: #{tpu_custom_call.1} parent=1 // pred_region
      _
    $region17: #{tpu_custom_call.1} parent=1 // pred_fallthru
      _
    // Predicated region
    $region18: #{tpu_custom_call.1} parent=1 // pred_check
      _
    $region19: #{tpu_custom_call.1} parent=1 // pred_check_branch
      %32 = sbr.rel (0) target = $region21
    $region20: #{tpu_custom_call.1} parent=1 // pred_region
      _
    $region21: #{tpu_custom_call.1} parent=1 // pred_fallthru
      _
    // Predicated region
    $region22: #{tpu_custom_call.1} parent=1 // pred_check
      _
    $region23: #{tpu_custom_call.1} parent=1 // pred_check_branch
      %34 = sbr.rel (0) target = $region25
    $region24: #{tpu_custom_call.1} parent=1 // pred_region
      %36 = dma.done [#allocation4], 2048
    $region25: #{tpu_custom_call.1} parent=1 // pred_fallthru
      _
    %p37 = scmp.eq.s32.totalorder 0, 0
    // Predicated region
    $region26: #{tpu_custom_call.1} parent=1 // pred_check
      %p38 = pneg %p37
    $region27: #{tpu_custom_call.1} parent=1 // pred_check_branch
      %40 = sbr.rel (%p38) target = $region29
    $region28: #{tpu_custom_call.1} parent=1 // pred_region
      %v41 = vld [vmem:[%s2] sm:$0xff]
      %v42 = vld [vmem:[%s2 + $0x8] sm:$0xff]
      %v43 = vld [vmem:[%s2 + $0x10] sm:$0xff]
      %v44 = vld [vmem:[%s2 + $0x18] sm:$0xff]
      %v45 = vld [vmem:[%s1] ss:$2 sm:$0x3]
      %47 = vset.pattern.permute.xlu0 0
      %48 = vperm.xlu0 %47, %v41
      %v49 = vpop.permute.xlu0 %48
      %52 = vset.pattern.permute.xlu0 0
      %53 = vperm.xlu0 %52, %v42
      %v54 = vpop.permute.xlu0 %53
      %57 = vset.pattern.permute.xlu0 0
      %58 = vperm.xlu0 %57, %v43
      %v59 = vpop.permute.xlu0 %58
      %62 = vset.pattern.permute.xlu0 0
      %63 = vperm.xlu0 %62, %v44
      %v64 = vpop.permute.xlu0 %63
      %v67 = vperm.slane %v45, 0
      %v68 = vperm.slane %v45, 1
      %v71 = vmul.f32 %v49, %v67
      %v72 = vmul.f32 %v49, %v68
      %v73 = vmul.f32 %v54, %v67
      %v74 = vmul.f32 %v54, %v68
      %v75 = vmul.f32 %v59, %v67
      %v76 = vmul.f32 %v59, %v68
      %v77 = vmul.f32 %v64, %v67
      %v78 = vmul.f32 %v64, %v68
      %v79 = vld [vmem:[%s3] sm:$0xff]
      %v80 = vld [vmem:[%s3 + $0x8] sm:$0xff]
      %v81 = vld [vmem:[%s3 + $0x10] sm:$0xff]
      %v82 = vld [vmem:[%s3 + $0x18] sm:$0xff]
      %s83 = scalar_lea.vmem %s1, 1
      %v84 = vld [vmem:[%s83] ss:$2 sm:$0x3]
      %86 = vset.pattern.permute.xlu0 0
      %87 = vperm.xlu0 %86, %v79
      %v88 = vpop.permute.xlu0 %87
      %91 = vset.pattern.permute.xlu0 0
      %92 = vperm.xlu0 %91, %v80
      %v93 = vpop.permute.xlu0 %92
      %96 = vset.pattern.permute.xlu0 0
      %97 = vperm.xlu0 %96, %v81
      %v98 = vpop.permute.xlu0 %97
      %101 = vset.pattern.permute.xlu0 0
      %102 = vperm.xlu0 %101, %v82
      %v103 = vpop.permute.xlu0 %102
      %v106 = vperm.slane %v84, 0
      %v107 = vperm.slane %v84, 1
      %v110 = vmul.f32 %v88, %v106
      %v111 = vmul.f32 %v88, %v107
      %v112 = vmul.f32 %v93, %v106
      %v113 = vmul.f32 %v93, %v107
      %v114 = vmul.f32 %v98, %v106
      %v115 = vmul.f32 %v98, %v107
      %v116 = vmul.f32 %v103, %v106
      %v117 = vmul.f32 %v103, %v107
      %v118 = vadd.f32 %v71, %v110
      %v119 = vadd.f32 %v72, %v111
      %v120 = vadd.f32 %v73, %v112
      %v121 = vadd.f32 %v74, %v113
      %v122 = vadd.f32 %v75, %v114
      %v123 = vadd.f32 %v76, %v115
      %v124 = vadd.f32 %v77, %v116
      %v125 = vadd.f32 %v78, %v117
      %v126 = vld [vmem:[%s4] sm:$0xff]
      %v127 = vld [vmem:[%s4 + $0x8] sm:$0xff]
      %v128 = vld [vmem:[%s4 + $0x10] sm:$0xff]
      %v129 = vld [vmem:[%s4 + $0x18] sm:$0xff]
      %131 = vset.pattern.permute.xlu0 0
      %132 = vperm.xlu0 %131, %v126
      %v133 = vpop.permute.xlu0 %132
      %136 = vset.pattern.permute.xlu0 0
      %137 = vperm.xlu0 %136, %v127
      %v138 = vpop.permute.xlu0 %137
      %141 = vset.pattern.permute.xlu0 0
      %142 = vperm.xlu0 %141, %v128
      %v143 = vpop.permute.xlu0 %142
      %146 = vset.pattern.permute.xlu0 0
      %147 = vperm.xlu0 %146, %v129
      %v148 = vpop.permute.xlu0 %147
      %v150 = vadd.f32 %v118, %v133
      %v151 = vadd.f32 %v119, %v133
      %v152 = vadd.f32 %v120, %v138
      %v153 = vadd.f32 %v121, %v138
      %v154 = vadd.f32 %v122, %v143
      %v155 = vadd.f32 %v123, %v143
      %v156 = vadd.f32 %v124, %v148
      %v157 = vadd.f32 %v125, %v148
      %158 = vst [vmem:[#allocation2] sm:$0xff] %v150
      %159 = vst [vmem:[#allocation2 + $0x8] sm:$0xff] %v151
      %160 = vst [vmem:[#allocation2 + $0x10] sm:$0xff] %v152
      %161 = vst [vmem:[#allocation2 + $0x18] sm:$0xff] %v153
      %162 = vst [vmem:[#allocation2 + $0x20] sm:$0xff] %v154
      %163 = vst [vmem:[#allocation2 + $0x28] sm:$0xff] %v155
      %164 = vst [vmem:[#allocation2 + $0x30] sm:$0xff] %v156
      %165 = vst [vmem:[#allocation2 + $0x38] sm:$0xff] %v157
    $region29: #{tpu_custom_call.1} parent=1 // pred_fallthru
      _
    %v166 = vld [vmem:[#allocation2] sm:$0xff]
    %v167 = vld [vmem:[#allocation2 + $0x8] sm:$0xff]
    %v168 = vld [vmem:[#allocation2 + $0x10] sm:$0xff]
    %v169 = vld [vmem:[#allocation2 + $0x18] sm:$0xff]
    %v170 = vld [vmem:[#allocation2 + $0x20] sm:$0xff]
    %v171 = vld [vmem:[#allocation2 + $0x28] sm:$0xff]
    %v172 = vld [vmem:[#allocation2 + $0x30] sm:$0xff]
    %v173 = vld [vmem:[#allocation2 + $0x38] sm:$0xff]
    %v174 = vld [vmem:[#allocation3] sm:$0xff]
    %v175 = vld [vmem:[#allocation3 + $0x8] sm:$0xff]
    %v176 = vld [vmem:[#allocation3 + $0x10] sm:$0xff]
    %v177 = vld [vmem:[#allocation3 + $0x18] sm:$0xff]
    %v178 = vld [vmem:[#allocation3 + $0x20] sm:$0xff]
    %v179 = vld [vmem:[#allocation3 + $0x28] sm:$0xff]
    %v180 = vld [vmem:[#allocation3 + $0x30] sm:$0xff]
    %v181 = vld [vmem:[#allocation3 + $0x38] sm:$0xff]
    %v182 = vadd.f32 %v174, %v166
    %v183 = vadd.f32 %v175, %v167
    %v184 = vadd.f32 %v176, %v168
    %v185 = vadd.f32 %v177, %v169
    %v186 = vadd.f32 %v178, %v170
    %v187 = vadd.f32 %v179, %v171
    %v188 = vadd.f32 %v180, %v172
    %v189 = vadd.f32 %v181, %v173
    %190 = vst [vmem:[#allocation6] sm:$0xff] %v182
    %191 = vst [vmem:[#allocation6 + $0x8] sm:$0xff] %v183
    %192 = vst [vmem:[#allocation6 + $0x10] sm:$0xff] %v184
    %193 = vst [vmem:[#allocation6 + $0x18] sm:$0xff] %v185
    %194 = vst [vmem:[#allocation6 + $0x20] sm:$0xff] %v186
    %195 = vst [vmem:[#allocation6 + $0x28] sm:$0xff] %v187
    %196 = vst [vmem:[#allocation6 + $0x30] sm:$0xff] %v188
    %197 = vst [vmem:[#allocation6 + $0x38] sm:$0xff] %v189
    %s198 = scalar_lea.vmem [#allocation3], 64
    %v199 = vld [vmem:[%s198] sm:$0xff]
    %v200 = vld [vmem:[%s198 + $0x8] sm:$0xff]
    %v201 = vld [vmem:[%s198 + $0x10] sm:$0xff]
    %v202 = vld [vmem:[%s198 + $0x18] sm:$0xff]
    %v203 = vld [vmem:[%s198 + $0x20] sm:$0xff]
    %v204 = vld [vmem:[%s198 + $0x28] sm:$0xff]
    %v205 = vld [vmem:[%s198 + $0x30] sm:$0xff]
    %v206 = vld [vmem:[%s198 + $0x38] sm:$0xff]
    %v207 = vadd.f32 %v199, %v166
    %v208 = vadd.f32 %v200, %v167
    %v209 = vadd.f32 %v201, %v168
    %v210 = vadd.f32 %v202, %v169
    %v211 = vadd.f32 %v203, %v170
    %v212 = vadd.f32 %v204, %v171
    %v213 = vadd.f32 %v205, %v172
    %v214 = vadd.f32 %v206, %v173
    %s215 = scalar_lea.vmem [#allocation6], 64
    %216 = vst [vmem:[%s215] sm:$0xff] %v207
    %217 = vst [vmem:[%s215 + $0x8] sm:$0xff] %v208
    %218 = vst [vmem:[%s215 + $0x10] sm:$0xff] %v209
    %219 = vst [vmem:[%s215 + $0x18] sm:$0xff] %v210
    %220 = vst [vmem:[%s215 + $0x20] sm:$0xff] %v211
    %221 = vst [vmem:[%s215 + $0x28] sm:$0xff] %v212
    %222 = vst [vmem:[%s215 + $0x30] sm:$0xff] %v213
    %223 = vst [vmem:[%s215 + $0x38] sm:$0xff] %v214
    // Predicated region
    $region30: #{tpu_custom_call.1} parent=1 // pred_check
      _
    $region31: #{tpu_custom_call.1} parent=1 // pred_check_branch
      %225 = sbr.rel (0) target = $region33
    $region32: #{tpu_custom_call.1} parent=1 // pred_region
      %227 = vsyncadd [#allocation5], 0
      %s228 = sshll.u32 [#allocation6], 4
      %s229 = int_to_ptr.vmem [resolvable:$true] %s228
      %s230 = sshll.u32 %s5, 4
      %s231 = int_to_ptr.hbm [resolvable:$true] %s230
      %236 = dma.vmem_to_hbm [thread:$0]  %s229, 2048, %s231, [#allocation5], 256, 256, 16
    $region33: #{tpu_custom_call.1} parent=1 // pred_fallthru
      _
    // Predicated region
    $region34: #{tpu_custom_call.1} parent=1 // pred_check
      _
    $region35: #{tpu_custom_call.1} parent=1 // pred_check_branch
      %238 = sbr.rel (0) target = $region37
    $region36: #{tpu_custom_call.1} parent=1 // pred_region
      %240 = dma.done [#allocation5], 2048
    $region37: #{tpu_custom_call.1} parent=1 // pred_fallthru
      _
    %241 = vsyncpa [#allocation4], 1
    %242 = vsyncpa [#allocation5], 1

</llo_original>
